<compile_context>
chip_gen: v6e
topology: v6e:2x2x1
jax: 0.10.0
libtpu: 0.0.40
codegen_flags: <defaults>
</compile_context>

<pallas_src>
import jax
import jax.numpy as jnp
from jax.experimental import pallas as pl
from jax.experimental.pallas import tpu as pltpu


def classifier_kernel(x_ref, w2_ref, b2_ref, w3_ref, b3_ref, o_ref):
    # ReLU in f32 (VPU), matmuls in bf16 on the MXU with f32 accumulation.
    h = jnp.maximum(x_ref[...].astype(jnp.float32), 0.0)              # F.relu(x)
    h = jnp.dot(h.astype(jnp.bfloat16), w2_ref[...],                  # fc2 (MXU, bf16)
                preferred_element_type=jnp.float32)
    h = h + b2_ref[...]                                               # bias, f32
    y = jnp.dot(h.astype(jnp.bfloat16), w3_ref[...],                  # fc3 (MXU, bf16)
                preferred_element_type=jnp.float32)
    y = y + b3_ref[...]                                               # bias, f32
    o_ref[...] = y.astype(o_ref.dtype)                                # lane-dense store


def prepare_params(w2, b2, w3, b3, class_num):
    """One-time param prep: transpose to (in, out), cast weights to bf16, and
    zero-pad the fc3 output axis up to a multiple of 128 lanes."""
    D = w2.shape[1]
    Cp = ((class_num + 127) // 128) * 128
    w2_t = jnp.asarray(w2, jnp.float32).T.astype(jnp.bfloat16)        # (D, D) bf16
    w3_t = jnp.zeros((D, Cp), jnp.bfloat16).at[:, :class_num].set(
        jnp.asarray(w3, jnp.float32).T.astype(jnp.bfloat16))          # (D, Cp) bf16
    b2_2d = jnp.asarray(b2, jnp.float32).reshape(1, D)                # (1, D)  f32
    b3_2d = jnp.zeros((1, Cp), jnp.float32).at[:, :class_num].set(
        jnp.asarray(b3, jnp.float32))                                 # (1, Cp) f32
    return w2_t, b2_2d, w3_t, b3_2d


def classifier_forward(x, params, class_num):
    """x: (B, D). params: output of prepare_params. Returns logits (B, class_num) f32."""
    w2_t, b2_2d, w3_t, b3_2d = params
    B, D = x.shape
    Cp = w3_t.shape[1]

    # Row tiling: single full-array block when B is small (no pipeline overhead),
    # 256-row tiles when B is large (weights stay resident, tiles stream).
    TM = B if B <= 256 else 256
    Bp = pl.cdiv(B, TM) * TM
    if Bp != B:
        x = jnp.pad(x, ((0, Bp - B), (0, 0)))
    grid = (Bp // TM,)

    out = pl.pallas_call(
        classifier_kernel,
        out_shape=jax.ShapeDtypeStruct((Bp, Cp), jnp.float32),
        grid=grid,
        in_specs=[
            pl.BlockSpec((TM, D), lambda i: (i, 0)),   # x: row-tiled
            pl.BlockSpec((D, D), lambda i: (0, 0)),    # w2: resident
            pl.BlockSpec((1, D), lambda i: (0, 0)),    # b2: resident
            pl.BlockSpec((D, Cp), lambda i: (0, 0)),   # w3 (padded): resident
            pl.BlockSpec((1, Cp), lambda i: (0, 0)),   # b3 (padded): resident
        ],
        out_specs=pl.BlockSpec((TM, Cp), lambda i: (i, 0)),
        compiler_params=pltpu.CompilerParams(
            dimension_semantics=("parallel",)),        # v7x: shard rows across both TCs
    )(x, w2_t, b2_2d, w3_t, b3_2d)
    return out[:B, :class_num]


def init_params(key, bottleneck_dim, class_num):
    """Matches init_weights: normal(0, 0.01) clamped to [-0.02, 0.02], zero biases.
    Returns PyTorch-layout (out_features, in_features) weights."""
    k2, k3 = jax.random.split(key, 2)
    w2 = jnp.clip(0.01 * jax.random.normal(k2, (bottleneck_dim, bottleneck_dim),
                                           dtype=jnp.float32), -0.02, 0.02)
    b2 = jnp.zeros((bottleneck_dim,), jnp.float32)
    w3 = jnp.clip(0.01 * jax.random.normal(k3, (class_num, bottleneck_dim),
                                           dtype=jnp.float32), -0.02, 0.02)
    b3 = jnp.zeros((class_num,), jnp.float32)
    return w2, b2, w3, b3


if __name__ == "__main__":
    B = 8                 # batch
    BOTTLENECK = 256      # bottleneck_dim (multiple of 128 for lane width)
    CLASS_NUM = 10        # class_num

    key = jax.random.PRNGKey(0)
    kx, kp = jax.random.split(key)
    x = jax.random.normal(kx, (B, BOTTLENECK), dtype=jnp.float32)
    w2, b2, w3, b3 = init_params(kp, BOTTLENECK, CLASS_NUM)
    params = prepare_params(w2, b2, w3, b3, CLASS_NUM)   # one-time transpose/pad/bf16

    out = classifier_forward(x, params, CLASS_NUM)
    out = jax.block_until_ready(out)
    assert out.shape == (B, CLASS_NUM)

    # Reference 1: identical bf16-matmul / f32-accumulate semantics (tight tolerance).
    w2_t, b2_2d, w3_t, b3_2d = params
    h = jnp.maximum(x, 0.0)
    h = jnp.dot(h.astype(jnp.bfloat16), w2_t, preferred_element_type=jnp.float32) + b2_2d
    ref_bf16 = (jnp.dot(h.astype(jnp.bfloat16), w3_t,
                        preferred_element_type=jnp.float32) + b3_2d)[:, :CLASS_NUM]
    assert jnp.allclose(out, ref_bf16, atol=1e-4, rtol=1e-4)

    # Reference 2: pure-f32 PyTorch-module semantics (loose tolerance for bf16 matmuls).
    ref_f32 = jnp.maximum(x, 0.0) @ w2.T + b2
    ref_f32 = ref_f32 @ w3.T + b3
    assert jnp.allclose(out, ref_f32, atol=5e-2, rtol=5e-2)

    print("KERNEL_OK")
</pallas_src>

<mosaic_0001>
module attributes {stable_mosaic.version = 11 : i64} {
  func.func @classifier_kernel(%arg0: i32, %arg1: memref<8x256xf32, #tpu.memory_space<vmem>>, %arg2: memref<256x256xbf16, #tpu.memory_space<vmem>>, %arg3: memref<1x256xf32, #tpu.memory_space<vmem>>, %arg4: memref<256x128xbf16, #tpu.memory_space<vmem>>, %arg5: memref<1x128xf32, #tpu.memory_space<vmem>>, %arg6: memref<8x128xf32, #tpu.memory_space<vmem>>) attributes {dimension_semantics = [#tpu.dimension_semantics<parallel>], iteration_bounds = array<i64: 1>, scalar_prefetch = 0 : i64, scratch_operands = 0 : i64, tpu.core_type = #tpu.core_type<tc>, window_params = [{transform_indices = @transform_0, window_bounds = array<i64: 8, 256>}, {pipeline_mode = #tpu.pipeline_mode<synchronous>, transform_indices = @transform_1, window_bounds = array<i64: 256, 256>}, {pipeline_mode = #tpu.pipeline_mode<synchronous>, transform_indices = @transform_2, window_bounds = array<i64: 1, 256>}, {pipeline_mode = #tpu.pipeline_mode<synchronous>, transform_indices = @transform_3, window_bounds = array<i64: 256, 128>}, {pipeline_mode = #tpu.pipeline_mode<synchronous>, transform_indices = @transform_4, window_bounds = array<i64: 1, 128>}, {transform_indices = @transform_5, window_bounds = array<i64: 8, 128>}]} {
    %c0 = arith.constant 0 : index
    %c0_0 = arith.constant 0 : index
    %0 = vector.load %arg1[%c0, %c0_0] : memref<8x256xf32, #tpu.memory_space<vmem>>, vector<8x256xf32>
    %cst = arith.constant 0.000000e+00 : f32
    %1 = vector.broadcast %cst : f32 to vector<8x256xf32>
    %2 = arith.maximumf %0, %1 : vector<8x256xf32>
    %3 = arith.truncf %2 : vector<8x256xf32> to vector<8x256xbf16>
    %c0_1 = arith.constant 0 : index
    %c0_2 = arith.constant 0 : index
    %4 = vector.load %arg2[%c0_1, %c0_2] : memref<256x256xbf16, #tpu.memory_space<vmem>>, vector<256x256xbf16>
    %cst_3 = arith.constant dense<0.000000e+00> : vector<8x256xf32>
    %5 = tpu.matmul %3, %4, %cst_3 {dimension_numbers = #tpu.dot_dimension_numbers<[1], [0], [0], [1], [0, 0, 1, 1], [], []>} : vector<8x256xbf16>, vector<256x256xbf16>, vector<8x256xf32> -> vector<8x256xf32>
    %c0_4 = arith.constant 0 : index
    %c0_5 = arith.constant 0 : index
    %6 = vector.load %arg3[%c0_4, %c0_5] : memref<1x256xf32, #tpu.memory_space<vmem>>, vector<1x256xf32>
    %7 = vector.broadcast %6 : vector<1x256xf32> to vector<8x256xf32>
    %8 = arith.addf %5, %7 : vector<8x256xf32>
    %9 = arith.truncf %8 : vector<8x256xf32> to vector<8x256xbf16>
    %c0_6 = arith.constant 0 : index
    %c0_7 = arith.constant 0 : index
    %10 = vector.load %arg4[%c0_6, %c0_7] : memref<256x128xbf16, #tpu.memory_space<vmem>>, vector<256x128xbf16>
    %cst_8 = arith.constant dense<0.000000e+00> : vector<8x128xf32>
    %11 = tpu.matmul %9, %10, %cst_8 {dimension_numbers = #tpu.dot_dimension_numbers<[1], [0], [0], [1], [0, 0, 1, 1], [], []>} : vector<8x256xbf16>, vector<256x128xbf16>, vector<8x128xf32> -> vector<8x128xf32>
    %c0_9 = arith.constant 0 : index
    %c0_10 = arith.constant 0 : index
    %12 = vector.load %arg5[%c0_9, %c0_10] : memref<1x128xf32, #tpu.memory_space<vmem>>, vector<1x128xf32>
    %13 = vector.broadcast %12 : vector<1x128xf32> to vector<8x128xf32>
    %14 = arith.addf %11, %13 : vector<8x128xf32>
    %c0_11 = arith.constant 0 : index
    %c0_12 = arith.constant 0 : index
    %15 = vector.load %arg6[%c0_11, %c0_12] : memref<8x128xf32, #tpu.memory_space<vmem>>, vector<8x128xf32>
    tpu.vector_store %arg6[%c0_11, %c0_12], %14 {strides = array<i32>} : memref<8x128xf32, #tpu.memory_space<vmem>>, vector<8x128xf32>,
    return
  }
  func.func @transform_0(%arg0: i32) -> (i32, i32) {
    %c0_i32 = arith.constant 0 : i32
    %c0_i32_0 = arith.constant 0 : i32
    return %arg0, %c0_i32 : i32, i32
  }
  func.func @transform_1(%arg0: i32) -> (i32, i32) {
    %c0_i32 = arith.constant 0 : i32
    %c0_i32_0 = arith.constant 0 : i32
    %c0_i32_1 = arith.constant 0 : i32
    return %c0_i32, %c0_i32_0 : i32, i32
  }
  func.func @transform_2(%arg0: i32) -> (i32, i32) {
    %c0_i32 = arith.constant 0 : i32
    %c0_i32_0 = arith.constant 0 : i32
    %c0_i32_1 = arith.constant 0 : i32
    return %c0_i32, %c0_i32_0 : i32, i32
  }
  func.func @transform_3(%arg0: i32) -> (i32, i32) {
    %c0_i32 = arith.constant 0 : i32
    %c0_i32_0 = arith.constant 0 : i32
    %c0_i32_1 = arith.constant 0 : i32
    return %c0_i32, %c0_i32_0 : i32, i32
  }
  func.func @transform_4(%arg0: i32) -> (i32, i32) {
    %c0_i32 = arith.constant 0 : i32
    %c0_i32_0 = arith.constant 0 : i32
    %c0_i32_1 = arith.constant 0 : i32
    return %c0_i32, %c0_i32_0 : i32, i32
  }
  func.func @transform_5(%arg0: i32) -> (i32, i32) {
    %c0_i32 = arith.constant 0 : i32
    %c0_i32_0 = arith.constant 0 : i32
    return %arg0, %c0_i32 : i32, i32
  }
}

</mosaic_0001>

<llo_original>
// kernel: tpu_custom_call.1
$region0: #{tpu_custom_call.1}
  #allocation0 [shape = 'u32[]', space=smem, size = 0x4, offset = 0x4, fixed_abs, tag = 'smem constant byte address 0x4 - core index']
  #allocation1 [shape = 'u32[144,128]{1,0:T(1,128)}', space=vmem, size = 0x12000, scoped, tag = 'internal scratch']
  %s0 = inlined_call_operand.hbm [shape: f32[8,256], index: 0, kind: input, shape index: {}]
  %s1 = inlined_call_operand.hbm [shape: bf16[256,256], index: 1, kind: input, shape index: {}]
  %s2 = inlined_call_operand.vmem [shape: f32[1,256], index: 2, kind: input, shape index: {}]
  %s3 = inlined_call_operand.hbm [shape: bf16[256,128], index: 3, kind: input, shape index: {}]
  %s4 = inlined_call_operand.vmem [shape: f32[1,128], index: 4, kind: input, shape index: {}]
  %s5 = inlined_call_operand.hbm [shape: f32[8,128], index: 5, kind: output, shape index: {}]
  %s6 = sld [smem:[#allocation0]]
  $region42: #{tpu_custom_call.1} parent=0
    _
  %s8 = ssub.s32 1, %s6
  %s9 = scalar_select 0, %s8, %s6
  $region1: #{tpu_custom_call.1} parent=0
    #allocation2 [shape = 'u8[8192]{0}', space=vmem, size = 0x2000, scoped, tag = 'input window, operand 0, single buffered']
    #allocation3 [shape = 's32[1]{0}', space=sflag, size = 0x4, scoped, tag = 'scoped memory for tpu_custom_call.1']
    #allocation4 [shape = 's32[1]{0}', space=sflag, size = 0x4, scoped, tag = 'scoped memory for tpu_custom_call.1']
    #allocation5 [shape = 'u8[131072]{0}', space=vmem, size = 0x20000, scoped, tag = 'input window, operand 1, single buffered']
    #allocation6 [shape = 's32[1]{0}', space=sflag, size = 0x4, scoped, tag = 'scoped memory for tpu_custom_call.1']
    #allocation7 [shape = 'u8[65536]{0}', space=vmem, size = 0x10000, scoped, tag = 'input window, operand 3, single buffered']
    #allocation8 [shape = 'u8[4096]{0}', space=vmem, size = 0x1000, scoped, tag = 'output window, operand 0, single buffered']
    %10 = vsyncpa [#allocation3], 0
    %11 = vsyncpa [#allocation6], 0
    %12 = vsyncpa [#allocation4], 0
    // Predicated region
    $region2: #{tpu_custom_call.1} parent=1 // pred_check
      _
    $region3: #{tpu_custom_call.1} parent=1 // pred_check_branch
      %14 = sbr.rel (0) target = $region5
    $region4: #{tpu_custom_call.1} parent=1 // pred_region
      %s16 = ssub.s32 256, 256
      %17 = vsyncadd [#allocation3], %s16
      %s19 = sshll.u32 [#allocation2], 4
      %s20 = int_to_ptr.vmem [resolvable:$true] %s19
      %22 = dma.hbm_to_vmem [thread:$0]  %s0, 256, %s20, [#allocation3]
    $region5: #{tpu_custom_call.1} parent=1 // pred_fallthru
      _
    // Predicated region
    $region6: #{tpu_custom_call.1} parent=1 // pred_check
      _
    $region7: #{tpu_custom_call.1} parent=1 // pred_check_branch
      %24 = sbr.rel (0) target = $region9
    $region8: #{tpu_custom_call.1} parent=1 // pred_region
      %s26 = ssub.s32 4096, 4096
      %27 = vsyncadd [#allocation6], %s26
      %s28 = sshll.u32 [#allocation5], 4
      %s29 = int_to_ptr.vmem [resolvable:$true] %s28
      %34 = dma.hbm_to_vmem [thread:$0]  %s1, 4096, %s29, [#allocation6], 128, 128, 8
    $region9: #{tpu_custom_call.1} parent=1 // pred_fallthru
      _
    // Predicated region
    $region10: #{tpu_custom_call.1} parent=1 // pred_check
      _
    $region11: #{tpu_custom_call.1} parent=1 // pred_check_branch
      %36 = sbr.rel (0) target = $region13
    $region12: #{tpu_custom_call.1} parent=1 // pred_region
      _
    $region13: #{tpu_custom_call.1} parent=1 // pred_fallthru
      _
    // Predicated region
    $region14: #{tpu_custom_call.1} parent=1 // pred_check
      _
    $region15: #{tpu_custom_call.1} parent=1 // pred_check_branch
      %38 = sbr.rel (0) target = $region17
    $region16: #{tpu_custom_call.1} parent=1 // pred_region
      %s40 = ssub.s32 2048, 2048
      %41 = vsyncadd [#allocation6], %s40
      %s42 = sshll.u32 [#allocation7], 4
      %s43 = int_to_ptr.vmem [resolvable:$true] %s42
      %48 = dma.hbm_to_vmem [thread:$0]  %s3, 2048, %s43, [#allocation6], 64, 64, 4
    $region17: #{tpu_custom_call.1} parent=1 // pred_fallthru
      _
    // Predicated region
    $region18: #{tpu_custom_call.1} parent=1 // pred_check
      _
    $region19: #{tpu_custom_call.1} parent=1 // pred_check_branch
      %50 = sbr.rel (0) target = $region21
    $region20: #{tpu_custom_call.1} parent=1 // pred_region
      _
    $region21: #{tpu_custom_call.1} parent=1 // pred_fallthru
      _
    // Predicated region
    $region22: #{tpu_custom_call.1} parent=1 // pred_check
      _
    $region23: #{tpu_custom_call.1} parent=1 // pred_check_branch
      %52 = sbr.rel (0) target = $region25
    $region24: #{tpu_custom_call.1} parent=1 // pred_region
      %53 = dma.done [#allocation3], 256
    $region25: #{tpu_custom_call.1} parent=1 // pred_fallthru
      _
    // Predicated region
    $region26: #{tpu_custom_call.1} parent=1 // pred_check
      _
    $region27: #{tpu_custom_call.1} parent=1 // pred_check_branch
      %55 = sbr.rel (0) target = $region29
    $region28: #{tpu_custom_call.1} parent=1 // pred_region
      %56 = dma.done [#allocation6], 4096
    $region29: #{tpu_custom_call.1} parent=1 // pred_fallthru
      _
    // Predicated region
    $region30: #{tpu_custom_call.1} parent=1 // pred_check
      _
    $region31: #{tpu_custom_call.1} parent=1 // pred_check_branch
      %58 = sbr.rel (0) target = $region33
    $region32: #{tpu_custom_call.1} parent=1 // pred_region
      %59 = dma.done [#allocation6], 2048
    $region33: #{tpu_custom_call.1} parent=1 // pred_fallthru
      _
    %v61 = vld [vmem:[#allocation2] sm:$0xff]
    %v62 = vld [vmem:[#allocation2 + $0x8] sm:$0xff]
    %v63 = vmax.f32 %v61, 0.0
    %v64 = vmax.f32 %v62, 0.0
    %v65 = vpack.c.bf16 %v63, %v63
    %v66 = vpack.c.bf16 %v64, %v64
    %v67 = vld [vmem:[#allocation5] sm:$0xff]
    %v68 = vld [vmem:[#allocation5 + $0x8] sm:$0xff]
    %v69 = vld [vmem:[#allocation5 + $0x10] sm:$0xff]
    %v70 = vld [vmem:[#allocation5 + $0x18] sm:$0xff]
    %v71 = vld [vmem:[#allocation5 + $0x20] sm:$0xff]
    %v72 = vld [vmem:[#allocation5 + $0x28] sm:$0xff]
    %v73 = vld [vmem:[#allocation5 + $0x30] sm:$0xff]
    %v74 = vld [vmem:[#allocation5 + $0x38] sm:$0xff]
    %v75 = vld [vmem:[#allocation5 + $0x40] sm:$0xff]
    %v76 = vld [vmem:[#allocation5 + $0x48] sm:$0xff]
    %v77 = vld [vmem:[#allocation5 + $0x50] sm:$0xff]
    %v78 = vld [vmem:[#allocation5 + $0x58] sm:$0xff]
    %v79 = vld [vmem:[#allocation5 + $0x60] sm:$0xff]
    %v80 = vld [vmem:[#allocation5 + $0x68] sm:$0xff]
    %v81 = vld [vmem:[#allocation5 + $0x70] sm:$0xff]
    %v82 = vld [vmem:[#allocation5 + $0x78] sm:$0xff]
    %v83 = vld [vmem:[#allocation5 + $0x80] sm:$0xff]
    %v84 = vld [vmem:[#allocation5 + $0x88] sm:$0xff]
    %v85 = vld [vmem:[#allocation5 + $0x90] sm:$0xff]
    %v86 = vld [vmem:[#allocation5 + $0x98] sm:$0xff]
    %v87 = vld [vmem:[#allocation5 + $0xa0] sm:$0xff]
    %v88 = vld [vmem:[#allocation5 + $0xa8] sm:$0xff]
    %v89 = vld [vmem:[#allocation5 + $0xb0] sm:$0xff]
    %v90 = vld [vmem:[#allocation5 + $0xb8] sm:$0xff]
    %v91 = vld [vmem:[#allocation5 + $0xc0] sm:$0xff]
    %v92 = vld [vmem:[#allocation5 + $0xc8] sm:$0xff]
    %v93 = vld [vmem:[#allocation5 + $0xd0] sm:$0xff]
    %v94 = vld [vmem:[#allocation5 + $0xd8] sm:$0xff]
    %v95 = vld [vmem:[#allocation5 + $0xe0] sm:$0xff]
    %v96 = vld [vmem:[#allocation5 + $0xe8] sm:$0xff]
    %v97 = vld [vmem:[#allocation5 + $0xf0] sm:$0xff]
    %v98 = vld [vmem:[#allocation5 + $0xf8] sm:$0xff]
    %v99 = vld [vmem:[%s2] sm:$0x3]
    %v101 = vlaneseq
    %v102 = vshrl.u32 %v101, 7
    %v103 = vsub.s32 0, %v102
    %v104 = vrot.slane %v99, %v103
    %v105 = vlaneseq
    %v106 = vshrl.u32 %v105, 7
    %v107 = vsub.s32 1, %v106
    %v108 = vrot.slane %v99, %v107
    %v143 = vunpack.c.l.b16 %v67
    %v144 = vunpack.c.h.b16 %v67
    %v145 = vunpack.c.l.b16 %v68
    %v146 = vunpack.c.h.b16 %v68
    %v147 = vunpack.c.l.b16 %v69
    %v148 = vunpack.c.h.b16 %v69
    %v149 = vunpack.c.l.b16 %v70
    %v150 = vunpack.c.h.b16 %v70
    %v151 = vunpack.c.l.b16 %v71
    %v152 = vunpack.c.h.b16 %v71
    %v153 = vunpack.c.l.b16 %v72
    %v154 = vunpack.c.h.b16 %v72
    %v155 = vunpack.c.l.b16 %v73
    %v156 = vunpack.c.h.b16 %v73
    %v157 = vunpack.c.l.b16 %v74
    %v158 = vunpack.c.h.b16 %v74
    %v159 = vunpack.c.l.b16 %v75
    %v160 = vunpack.c.h.b16 %v75
    %v161 = vunpack.c.l.b16 %v76
    %v162 = vunpack.c.h.b16 %v76
    %v163 = vunpack.c.l.b16 %v77
    %v164 = vunpack.c.h.b16 %v77
    %v165 = vunpack.c.l.b16 %v78
    %v166 = vunpack.c.h.b16 %v78
    %v167 = vunpack.c.l.b16 %v79
    %v168 = vunpack.c.h.b16 %v79
    %v169 = vunpack.c.l.b16 %v80
    %v170 = vunpack.c.h.b16 %v80
    %v171 = vunpack.c.l.b16 %v81
    %v172 = vunpack.c.h.b16 %v81
    %v173 = vunpack.c.l.b16 %v82
    %v174 = vunpack.c.h.b16 %v82
    %v175 = vunpack.c.l.b16 %v83
    %v176 = vunpack.c.h.b16 %v83
    %v177 = vunpack.c.l.b16 %v84
    %v178 = vunpack.c.h.b16 %v84
    %v179 = vunpack.c.l.b16 %v85
    %v180 = vunpack.c.h.b16 %v85
    %v181 = vunpack.c.l.b16 %v86
    %v182 = vunpack.c.h.b16 %v86
    %v183 = vunpack.c.l.b16 %v87
    %v184 = vunpack.c.h.b16 %v87
    %v185 = vunpack.c.l.b16 %v88
    %v186 = vunpack.c.h.b16 %v88
    %v187 = vunpack.c.l.b16 %v89
    %v188 = vunpack.c.h.b16 %v89
    %v189 = vunpack.c.l.b16 %v90
    %v190 = vunpack.c.h.b16 %v90
    %v191 = vunpack.c.l.b16 %v91
    %v192 = vunpack.c.h.b16 %v91
    %v193 = vunpack.c.l.b16 %v92
    %v194 = vunpack.c.h.b16 %v92
    %v195 = vunpack.c.l.b16 %v93
    %v196 = vunpack.c.h.b16 %v93
    %v197 = vunpack.c.l.b16 %v94
    %v198 = vunpack.c.h.b16 %v94
    %v199 = vunpack.c.l.b16 %v95
    %v200 = vunpack.c.h.b16 %v95
    %v201 = vunpack.c.l.b16 %v96
    %v202 = vunpack.c.h.b16 %v96
    %v203 = vunpack.c.l.b16 %v97
    %v204 = vunpack.c.h.b16 %v97
    %v205 = vunpack.c.l.b16 %v98
    %v206 = vunpack.c.h.b16 %v98
    %v207 = vpack.c.b16 %v145, %v143
    %v208 = vpack.c.b16 %v146, %v144
    %v209 = vpack.c.b16 %v149, %v147
    %v210 = vpack.c.b16 %v150, %v148
    %v211 = vpack.c.b16 %v153, %v151
    %v212 = vpack.c.b16 %v154, %v152
    %v213 = vpack.c.b16 %v157, %v155
    %v214 = vpack.c.b16 %v158, %v156
    %v215 = vpack.c.b16 %v161, %v159
    %v216 = vpack.c.b16 %v162, %v160
    %v217 = vpack.c.b16 %v165, %v163
    %v218 = vpack.c.b16 %v166, %v164
    %v219 = vpack.c.b16 %v169, %v167
    %v220 = vpack.c.b16 %v170, %v168
    %v221 = vpack.c.b16 %v173, %v171
    %v222 = vpack.c.b16 %v174, %v172
    %v223 = vpack.c.b16 %v177, %v175
    %v224 = vpack.c.b16 %v178, %v176
    %v225 = vpack.c.b16 %v181, %v179
    %v226 = vpack.c.b16 %v182, %v180
    %v227 = vpack.c.b16 %v185, %v183
    %v228 = vpack.c.b16 %v186, %v184
    %v229 = vpack.c.b16 %v189, %v187
    %v230 = vpack.c.b16 %v190, %v188
    %v231 = vpack.c.b16 %v193, %v191
    %v232 = vpack.c.b16 %v194, %v192
    %v233 = vpack.c.b16 %v197, %v195
    %v234 = vpack.c.b16 %v198, %v196
    %v235 = vpack.c.b16 %v201, %v199
    %v236 = vpack.c.b16 %v202, %v200
    %v237 = vpack.c.b16 %v205, %v203
    %v238 = vpack.c.b16 %v206, %v204
    %271 = vmatprep.subr.bf16.mxu0 %v222
    %272 = vmatpush1.bf16.msra.mxu0 %v221
    %273 = vmatprep.subr.bf16.mxu0 %v220
    %274 = vmatpush1.bf16.msra.mxu0 %v219
    %275 = vmatprep.subr.bf16.mxu0 %v218
    %276 = vmatpush1.bf16.msra.mxu0 %v217
    %277 = vmatprep.subr.bf16.mxu0 %v216
    %278 = vmatpush1.bf16.msra.mxu0 %v215
    %279 = vmatprep.subr.bf16.mxu0 %v214
    %280 = vmatpush1.bf16.msra.mxu0 %v213
    %281 = vmatprep.subr.bf16.mxu0 %v212
    %282 = vmatpush1.bf16.msra.mxu0 %v211
    %283 = vmatprep.subr.bf16.mxu0 %v210
    %284 = vmatpush1.bf16.msra.mxu0 %v209
    %285 = vmatprep.subr.bf16.mxu0 %v208
    %286 = vmatpush1.bf16.msra.mxu0 %v207
    %287 = vmatprep.subr.bf16.mxu0 %v238
    %288 = vmatpush2.bf16.msra.mxu0 %v237
    %289 = vmatprep.subr.bf16.mxu0 %v236
    %290 = vmatpush2.bf16.msra.mxu0 %v235
    %291 = vmatprep.subr.bf16.mxu0 %v234
    %292 = vmatpush2.bf16.msra.mxu0 %v233
    %293 = vmatprep.subr.bf16.mxu0 %v232
    %294 = vmatpush2.bf16.msra.mxu0 %v231
    %295 = vmatprep.subr.bf16.mxu0 %v230
    %296 = vmatpush2.bf16.msra.mxu0 %v229
    %297 = vmatprep.subr.bf16.mxu0 %v228
    %298 = vmatpush2.bf16.msra.mxu0 %v227
    %299 = vmatprep.subr.bf16.mxu0 %v226
    %300 = vmatpush2.bf16.msra.mxu0 %v225
    %301 = vmatprep.subr.bf16.mxu0 %v224
    %302 = vmatpush2.bf16.msra.mxu0 %v223
    %303 = vmatprep.mubr.bf16.mxu0 %v66
    %304 = vmatmul.mubr.bf16.gmra.mxu0 %v65
    %v305 = vpop.f32.mrf.mxu0
    %v306 = vadd.f32 %v104, %v305
    %v307 = vpop.f32.mrf.mxu0
    %v308 = vadd.f32 %v108, %v307
    %v309 = vpop.f32.mrf.mxu0
    %v310 = vpop.f32.mrf.mxu0
    %311 = vdwg.mxu0
    %v312 = vpack.c.bf16 %v306, %v306
    %v313 = vpack.c.bf16 %v308, %v308
    %v314 = vld [vmem:[#allocation7] sm:$0xf]
    %v315 = vld [vmem:[#allocation7 + $0x4] sm:$0xf]
    %v316 = vld [vmem:[#allocation7 + $0x8] sm:$0xf]
    %v317 = vld [vmem:[#allocation7 + $0xc] sm:$0xf]
    %v318 = vld [vmem:[#allocation7 + $0x10] sm:$0xf]
    %v319 = vld [vmem:[#allocation7 + $0x14] sm:$0xf]
    %v320 = vld [vmem:[#allocation7 + $0x18] sm:$0xf]
    %v321 = vld [vmem:[#allocation7 + $0x1c] sm:$0xf]
    %v322 = vld [vmem:[#allocation7 + $0x20] sm:$0xf]
    %v323 = vld [vmem:[#allocation7 + $0x24] sm:$0xf]
    %v324 = vld [vmem:[#allocation7 + $0x28] sm:$0xf]
    %v325 = vld [vmem:[#allocation7 + $0x2c] sm:$0xf]
    %v326 = vld [vmem:[#allocation7 + $0x30] sm:$0xf]
    %v327 = vld [vmem:[#allocation7 + $0x34] sm:$0xf]
    %v328 = vld [vmem:[#allocation7 + $0x38] sm:$0xf]
    %v329 = vld [vmem:[#allocation7 + $0x3c] sm:$0xf]
    %v330 = vld [vmem:[#allocation7 + $0x40] sm:$0xf]
    %v331 = vld [vmem:[#allocation7 + $0x44] sm:$0xf]
    %v332 = vld [vmem:[#allocation7 + $0x48] sm:$0xf]
    %v333 = vld [vmem:[#allocation7 + $0x4c] sm:$0xf]
    %v334 = vld [vmem:[#allocation7 + $0x50] sm:$0xf]
    %v335 = vld [vmem:[#allocation7 + $0x54] sm:$0xf]
    %v336 = vld [vmem:[#allocation7 + $0x58] sm:$0xf]
    %v337 = vld [vmem:[#allocation7 + $0x5c] sm:$0xf]
    %v338 = vld [vmem:[#allocation7 + $0x60] sm:$0xf]
    %v339 = vld [vmem:[#allocation7 + $0x64] sm:$0xf]
    %v340 = vld [vmem:[#allocation7 + $0x68] sm:$0xf]
    %v341 = vld [vmem:[#allocation7 + $0x6c] sm:$0xf]
    %v342 = vld [vmem:[#allocation7 + $0x70] sm:$0xf]
    %v343 = vld [vmem:[#allocation7 + $0x74] sm:$0xf]
    %v344 = vld [vmem:[#allocation7 + $0x78] sm:$0xf]
    %v345 = vld [vmem:[#allocation7 + $0x7c] sm:$0xf]
    %v346 = vld [vmem:[%s4] sm:$0x1]
    %v348 = vlaneseq
    %v349 = vshrl.u32 %v348, 7
    %v350 = vsub.s32 0, %v349
    %v351 = vrot.slane %v346, %v350
    %v385 = vunpack.c.l.b16 %v314
    %v386 = vunpack.c.l.b16 %v315
    %v387 = vunpack.c.l.b16 %v316
    %v388 = vunpack.c.l.b16 %v317
    %v389 = vunpack.c.l.b16 %v318
    %v390 = vunpack.c.l.b16 %v319
    %v391 = vunpack.c.l.b16 %v320
    %v392 = vunpack.c.l.b16 %v321
    %v393 = vunpack.c.l.b16 %v322
    %v394 = vunpack.c.l.b16 %v323
    %v395 = vunpack.c.l.b16 %v324
    %v396 = vunpack.c.l.b16 %v325
    %v397 = vunpack.c.l.b16 %v326
    %v398 = vunpack.c.l.b16 %v327
    %v399 = vunpack.c.l.b16 %v328
    %v400 = vunpack.c.l.b16 %v329
    %v401 = vunpack.c.l.b16 %v330
    %v402 = vunpack.c.l.b16 %v331
    %v403 = vunpack.c.l.b16 %v332
    %v404 = vunpack.c.l.b16 %v333
    %v405 = vunpack.c.l.b16 %v334
    %v406 = vunpack.c.l.b16 %v335
    %v407 = vunpack.c.l.b16 %v336
    %v408 = vunpack.c.l.b16 %v337
    %v409 = vunpack.c.l.b16 %v338
    %v410 = vunpack.c.l.b16 %v339
    %v411 = vunpack.c.l.b16 %v340
    %v412 = vunpack.c.l.b16 %v341
    %v413 = vunpack.c.l.b16 %v342
    %v414 = vunpack.c.l.b16 %v343
    %v415 = vunpack.c.l.b16 %v344
    %v416 = vunpack.c.l.b16 %v345
    %v417 = vpack.c.b16 %v386, %v385
    %v418 = vpack.c.b16 %v388, %v387
    %v419 = vpack.c.b16 %v390, %v389
    %v420 = vpack.c.b16 %v392, %v391
    %v421 = vpack.c.b16 %v394, %v393
    %v422 = vpack.c.b16 %v396, %v395
    %v423 = vpack.c.b16 %v398, %v397
    %v424 = vpack.c.b16 %v400, %v399
    %v425 = vpack.c.b16 %v402, %v401
    %v426 = vpack.c.b16 %v404, %v403
    %v427 = vpack.c.b16 %v406, %v405
    %v428 = vpack.c.b16 %v408, %v407
    %v429 = vpack.c.b16 %v410, %v409
    %v430 = vpack.c.b16 %v412, %v411
    %v431 = vpack.c.b16 %v414, %v413
    %v432 = vpack.c.b16 %v416, %v415
    %449 = vmatprep.subr.bf16.mxu0 0
    %450 = vmatpush1.bf16.msra.mxu0 %v424
    %451 = vmatprep.subr.bf16.mxu0 0
    %452 = vmatpush1.bf16.msra.mxu0 %v423
    %453 = vmatprep.subr.bf16.mxu0 0
    %454 = vmatpush1.bf16.msra.mxu0 %v422
    %455 = vmatprep.subr.bf16.mxu0 0
    %456 = vmatpush1.bf16.msra.mxu0 %v421
    %457 = vmatprep.subr.bf16.mxu0 0
    %458 = vmatpush1.bf16.msra.mxu0 %v420
    %459 = vmatprep.subr.bf16.mxu0 0
    %460 = vmatpush1.bf16.msra.mxu0 %v419
    %461 = vmatprep.subr.bf16.mxu0 0
    %462 = vmatpush1.bf16.msra.mxu0 %v418
    %463 = vmatprep.subr.bf16.mxu0 0
    %464 = vmatpush1.bf16.msra.mxu0 %v417
    %465 = vmatprep.subr.bf16.mxu0 0
    %466 = vmatpush2.bf16.msra.mxu0 %v432
    %467 = vmatprep.subr.bf16.mxu0 0
    %468 = vmatpush2.bf16.msra.mxu0 %v431
    %469 = vmatprep.subr.bf16.mxu0 0
    %470 = vmatpush2.bf16.msra.mxu0 %v430
    %471 = vmatprep.subr.bf16.mxu0 0
    %472 = vmatpush2.bf16.msra.mxu0 %v429
    %473 = vmatprep.subr.bf16.mxu0 0
    %474 = vmatpush2.bf16.msra.mxu0 %v428
    %475 = vmatprep.subr.bf16.mxu0 0
    %476 = vmatpush2.bf16.msra.mxu0 %v427
    %477 = vmatprep.subr.bf16.mxu0 0
    %478 = vmatpush2.bf16.msra.mxu0 %v426
    %479 = vmatprep.subr.bf16.mxu0 0
    %480 = vmatpush2.bf16.msra.mxu0 %v425
    %481 = vmatprep.mubr.bf16.mxu0 %v313
    %482 = vmatmul.mubr.bf16.gmra.mxu0 %v312
    %v483 = vpop.f32.mrf.mxu0
    %v484 = vadd.f32 %v351, %v483
    %v485 = vpop.f32.mrf.mxu0
    %v486 = vpop.f32.mrf.mxu0
    %v487 = vpop.f32.mrf.mxu0
    %488 = vdwg.mxu0
    %489 = vst [vmem:[#allocation8] sm:$0xff] %v484
    // Predicated region
    $region34: #{tpu_custom_call.1} parent=1 // pred_check
      _
    $region35: #{tpu_custom_call.1} parent=1 // pred_check_branch
      %491 = sbr.rel (0) target = $region37
    $region36: #{tpu_custom_call.1} parent=1 // pred_region
      %s493 = ssub.s32 128, 128
      %494 = vsyncadd [#allocation4], %s493
      %s496 = sshll.u32 [#allocation8], 4
      %s497 = int_to_ptr.vmem [resolvable:$true] %s496
      %499 = dma.vmem_to_hbm [thread:$0]  %s497, 128, %s5, [#allocation4]
    $region37: #{tpu_custom_call.1} parent=1 // pred_fallthru
      _
    // Predicated region
    $region38: #{tpu_custom_call.1} parent=1 // pred_check
      _
    $region39: #{tpu_custom_call.1} parent=1 // pred_check_branch
      %501 = sbr.rel (0) target = $region41
    $region40: #{tpu_custom_call.1} parent=1 // pred_region
      %502 = dma.done [#allocation4], 128
    $region41: #{tpu_custom_call.1} parent=1 // pred_fallthru
      _
    %503 = vsyncpa [#allocation3], 1
    %504 = vsyncpa [#allocation6], 1
    %505 = vsyncpa [#allocation4], 1

</llo_original>
